<compile_context>
chip_gen: v6e
topology: v6e:2x2x1
jax: 0.10.0
libtpu: 0.0.40
codegen_flags: <defaults>
</compile_context>

<pallas_src>
import math

import jax
import jax.numpy as jnp
from jax import lax
from jax.experimental import pallas as pl
from jax.experimental.pallas import tpu as pltpu


def _head_kernel(w_ref, x_ref, b_ref, o_ref):
    """One row tile of the linear head with a lane-dense output.

    w_ref: [J, Dp]    VMEM  block-diagonal packed weight (resident across grid)
    x_ref: [TMP, Dp]  VMEM  one tile of packed rows (Dp = 128 when packed)
    b_ref: [J, 1]     VMEM  packed bias column
    o_ref: [J, TMP]   VMEM  lane-dense output tile (TMP rows on the lane axis)
    """
    # [J, Dp] . [TMP, Dp]^T (contract on Dp) -> [J, TMP], f32 accumulation.
    acc = lax.dot_general(
        w_ref[...], x_ref[...],
        dimension_numbers=(((1,), (1,)), ((), ())),
        preferred_element_type=jnp.float32,
    )
    # Single broadcast bias add (one VALU op) instead of a per-row epilogue.
    o_ref[...] = (acc + b_ref[...]).astype(o_ref.dtype)


def _round_up(a, b):
    return ((a + b - 1) // b) * b


def head_forward(x, weight, bias, *, min_pallas_rows=1024):
    """Equivalent to PyTorch: nn.Linear(dim, num_scores)(x).

    x:      [B, S, D]  float32
    weight: [N, D]     float32  (PyTorch nn.Linear weight layout)
    bias:   [N]        float32
    returns [B, S, N]  float32
    """
    B, S, D = x.shape
    N = weight.shape[0]
    M = B * S

    # Tiny-workload fast path: pallas_call launch / padding overhead dominates.
    if M < min_pallas_rows:
        return (x.reshape(M, D) @ weight.T + bias).reshape(B, S, N)

    # ---- Lane repack: fold P consecutive rows into one 128-lane row. -------
    P = 128 // D if (D < 128 and 128 % D == 0) else 1
    Dp = P * D            # packed feature width (128 when packing applies)
    J = P * N             # packed output rows

    # ---- Row-tile selection (in packed rows). -------------------------------
    M_pack = pl.cdiv(M, P)
    itemsize = jnp.dtype(x.dtype).itemsize
    row_bytes = _round_up(Dp, 128) * itemsize          # lane-padded VMEM row
    if M_pack <= 1024:
        # Small single tile (sublane aligned).
        tm_p = _round_up(max(M_pack, 8), 8)
    else:
        # Big tiles amortize the ~0.35 us/step overhead; cap each double-
        # buffered x buffer at ~4 MiB (safe on v5e's 16 MiB scoped default),
        # and produce >= 2 tiles so v7x can use both TensorCores.
        vmem_cap = max(128, ((4 << 20) // row_bytes) // 128 * 128)
        tm_p = min(2048, vmem_cap, _round_up(pl.cdiv(M_pack, 2), 128))
    num_tiles = pl.cdiv(M_pack, tm_p)
    M_pack_pad = num_tiles * tm_p
    M_pad = M_pack_pad * P

    x2d = x.reshape(M, D)
    if M_pad != M:
        x2d = jnp.pad(x2d, ((0, M_pad - M), (0, 0)))
    x_pack = x2d.reshape(M_pack_pad, Dp)               # free, contiguous reshape

    # Block-diagonal packed weight: row p*N+n holds weight[n] in lanes
    # [p*D, (p+1)*D); packed bias repeats bias P times (row p*N+n -> bias[n]).
    if P == 1:
        w_pack = weight
    else:
        eye = jnp.eye(P, dtype=weight.dtype)
        w_pack = (eye[:, None, :, None] * weight[None, :, None, :]).reshape(J, Dp)
    b_pack = jnp.tile(bias, P).reshape(J, 1).astype(jnp.float32)

    cost = pl.CostEstimate(
        flops=2 * M * D * N,
        transcendentals=0,
        bytes_accessed=itemsize * (M * D + Dp * J + M * N),
    )

    # TODO(synk): if a bundle dump shows the (degenerate, N=1) MXU dot still
    # binding after the K=128 repack, switch to a VPU broadcast-multiply +
    # sublane reduction; cannot verify without a hardware trace here.
    out_t = pl.pallas_call(
        _head_kernel,
        out_shape=jax.ShapeDtypeStruct((J, M_pack_pad), x.dtype),
        grid_spec=pltpu.PrefetchScalarGridSpec(
            num_scalar_prefetch=0,
            grid=(num_tiles,),
            in_specs=[
                pl.BlockSpec((J, Dp), lambda i: (0, 0)),     # packed weight (resident)
                pl.BlockSpec((tm_p, Dp), lambda i: (i, 0)),  # packed x row tile
                pl.BlockSpec((J, 1), lambda i: (0, 0)),      # packed bias column
            ],
            out_specs=pl.BlockSpec((J, tm_p), lambda i: (0, i)),
        ),
        compiler_params=pltpu.CompilerParams(
            dimension_semantics=("parallel",)),
        cost_estimate=cost,
    )(w_pack, x_pack, b_pack)

    # De-interleave in the wrapper: out_t[p*N + n, r] == y[r*P + p, n].
    y2d = jnp.transpose(out_t.reshape(P, N, M_pack_pad), (2, 0, 1)).reshape(M_pad, N)
    return y2d[:M].reshape(B, S, N)


if __name__ == "__main__":
    # Shapes consistent with the module: head(dim=32, num_scores=1).
    D, N = 32, 1

    key = jax.random.PRNGKey(0)
    kx1, kx2, kw, kb = jax.random.split(key, 4)

    # Deterministic parameter init mirroring nn.Linear's default
    # (uniform in [-1/sqrt(dim), 1/sqrt(dim)]).
    bound = 1.0 / math.sqrt(D)
    weight = jax.random.uniform(kw, (N, D), jnp.float32, -bound, bound)
    bias = jax.random.uniform(kb, (N,), jnp.float32, -bound, bound)

    # 1) Small spec-consistent shape, forced through the Pallas kernel path.
    B1, S1 = 2, 8
    x1 = jax.random.normal(kx1, (B1, S1, D), jnp.float32)
    out1 = jax.block_until_ready(head_forward(x1, weight, bias, min_pallas_rows=0))
    ref1 = x1 @ weight.T + bias
    assert out1.shape == (B1, S1, N)
    assert jnp.allclose(out1, ref1, atol=1e-5, rtol=1e-5)

    # 2) Larger shape exercising the multi-tile, pipelined grid path.
    B2, S2 = 8, 2048
    x2 = jax.random.normal(kx2, (B2, S2, D), jnp.float32)
    out2 = jax.block_until_ready(head_forward(x2, weight, bias))
    ref2 = x2 @ weight.T + bias
    assert out2.shape == (B2, S2, N)
    assert jnp.allclose(out2, ref2, atol=1e-5, rtol=1e-5)

    print("KERNEL_OK")
</pallas_src>

<mosaic_0001>
module attributes {stable_mosaic.version = 11 : i64} {
  func.func @_head_kernel(%arg0: i32, %arg1: memref<4x128xf32, #tpu.memory_space<vmem>>, %arg2: memref<8x128xf32, #tpu.memory_space<vmem>>, %arg3: memref<4x1xf32, #tpu.memory_space<vmem>>, %arg4: memref<4x8xf32, #tpu.memory_space<vmem>>) attributes {dimension_semantics = [#tpu.dimension_semantics<parallel>], iteration_bounds = array<i64: 1>, scalar_prefetch = 0 : i64, scratch_operands = 0 : i64, tpu.core_type = #tpu.core_type<tc>, window_params = [{pipeline_mode = #tpu.pipeline_mode<synchronous>, transform_indices = @transform_0, window_bounds = array<i64: 4, 128>}, {transform_indices = @transform_1, window_bounds = array<i64: 8, 128>}, {pipeline_mode = #tpu.pipeline_mode<synchronous>, transform_indices = @transform_2, window_bounds = array<i64: 4, 1>}, {transform_indices = @transform_3, window_bounds = array<i64: 4, 8>}]} {
    %c0 = arith.constant 0 : index
    %c0_0 = arith.constant 0 : index
    %0 = vector.load %arg1[%c0, %c0_0] : memref<4x128xf32, #tpu.memory_space<vmem>>, vector<4x128xf32>
    %c0_1 = arith.constant 0 : index
    %c0_2 = arith.constant 0 : index
    %1 = vector.load %arg2[%c0_1, %c0_2] : memref<8x128xf32, #tpu.memory_space<vmem>>, vector<8x128xf32>
    %cst = arith.constant dense<0.000000e+00> : vector<4x8xf32>
    %2 = tpu.matmul %0, %1, %cst {dimension_numbers = #tpu.dot_dimension_numbers<[1], [1], [0], [0], [0, 0, 1, 0], [], []>} : vector<4x128xf32>, vector<8x128xf32>, vector<4x8xf32> -> vector<4x8xf32>
    %c0_3 = arith.constant 0 : index
    %c0_4 = arith.constant 0 : index
    %3 = vector.load %arg3[%c0_3, %c0_4] : memref<4x1xf32, #tpu.memory_space<vmem>>, vector<4x1xf32>
    %4 = vector.broadcast %3 : vector<4x1xf32> to vector<4x8xf32>
    %5 = arith.addf %2, %4 : vector<4x8xf32>
    %c0_5 = arith.constant 0 : index
    %c0_6 = arith.constant 0 : index
    %6 = vector.load %arg4[%c0_5, %c0_6] : memref<4x8xf32, #tpu.memory_space<vmem>>, vector<4x8xf32>
    tpu.vector_store %arg4[%c0_5, %c0_6], %5 {strides = array<i32>} : memref<4x8xf32, #tpu.memory_space<vmem>>, vector<4x8xf32>,
    return
  }
  func.func @transform_0(%arg0: i32) -> (i32, i32) {
    %c0_i32 = arith.constant 0 : i32
    %c0_i32_0 = arith.constant 0 : i32
    %c0_i32_1 = arith.constant 0 : i32
    return %c0_i32, %c0_i32_0 : i32, i32
  }
  func.func @transform_1(%arg0: i32) -> (i32, i32) {
    %c0_i32 = arith.constant 0 : i32
    %c0_i32_0 = arith.constant 0 : i32
    return %arg0, %c0_i32 : i32, i32
  }
  func.func @transform_2(%arg0: i32) -> (i32, i32) {
    %c0_i32 = arith.constant 0 : i32
    %c0_i32_0 = arith.constant 0 : i32
    %c0_i32_1 = arith.constant 0 : i32
    return %c0_i32, %c0_i32_0 : i32, i32
  }
  func.func @transform_3(%arg0: i32) -> (i32, i32) {
    %c0_i32 = arith.constant 0 : i32
    %c0_i32_0 = arith.constant 0 : i32
    return %c0_i32, %arg0 : i32, i32
  }
}

</mosaic_0001>

<llo_original>
// kernel: tpu_custom_call.1
$region0: #{tpu_custom_call.1}
  #allocation0 [shape = 'u32[]', space=smem, size = 0x4, offset = 0x4, fixed_abs, tag = 'smem constant byte address 0x4 - core index']
  #allocation1 [shape = 'u32[144,128]{1,0:T(1,128)}', space=vmem, size = 0x12000, scoped, tag = 'internal scratch']
  %s0 = inlined_call_operand.vmem [shape: f32[4,128], index: 0, kind: input, shape index: {}]
  %s1 = inlined_call_operand.hbm [shape: f32[8,128], index: 1, kind: input, shape index: {}]
  %s2 = inlined_call_operand.vmem [shape: f32[4,1], index: 2, kind: input, shape index: {}]
  %s3 = inlined_call_operand.hbm [shape: f32[4,8], index: 3, kind: output, shape index: {}]
  %s4 = sld [smem:[#allocation0]]
  $region26: #{tpu_custom_call.1} parent=0
    _
  %s6 = ssub.s32 1, %s4
  %s7 = scalar_select 0, %s6, %s4
  $region1: #{tpu_custom_call.1} parent=0
    #allocation2 [shape = 'u8[4096]{0}', space=vmem, size = 0x1000, scoped, tag = 'input window, operand 1, single buffered']
    #allocation3 [shape = 's32[1]{0}', space=sflag, size = 0x4, scoped, tag = 'scoped memory for tpu_custom_call.1']
    #allocation4 [shape = 's32[1]{0}', space=sflag, size = 0x4, scoped, tag = 'scoped memory for tpu_custom_call.1']
    #allocation5 [shape = 'u8[2048]{0}', space=vmem, size = 0x800, scoped, tag = 'output window, operand 0, single buffered']
    %8 = vsyncpa [#allocation3], 0
    %9 = vsyncpa [#allocation4], 0
    // Predicated region
    $region2: #{tpu_custom_call.1} parent=1 // pred_check
      _
    $region3: #{tpu_custom_call.1} parent=1 // pred_check_branch
      %11 = sbr.rel (0) target = $region5
    $region4: #{tpu_custom_call.1} parent=1 // pred_region
      _
    $region5: #{tpu_custom_call.1} parent=1 // pred_fallthru
      _
    // Predicated region
    $region6: #{tpu_custom_call.1} parent=1 // pred_check
      _
    $region7: #{tpu_custom_call.1} parent=1 // pred_check_branch
      %13 = sbr.rel (0) target = $region9
    $region8: #{tpu_custom_call.1} parent=1 // pred_region
      %s15 = ssub.s32 128, 128
      %16 = vsyncadd [#allocation3], %s15
      %s18 = sshll.u32 [#allocation2], 4
      %s19 = int_to_ptr.vmem [resolvable:$true] %s18
      %21 = dma.hbm_to_vmem [thread:$0]  %s1, 128, %s19, [#allocation3]
    $region9: #{tpu_custom_call.1} parent=1 // pred_fallthru
      _
    // Predicated region
    $region10: #{tpu_custom_call.1} parent=1 // pred_check
      _
    $region11: #{tpu_custom_call.1} parent=1 // pred_check_branch
      %23 = sbr.rel (0) target = $region13
    $region12: #{tpu_custom_call.1} parent=1 // pred_region
      _
    $region13: #{tpu_custom_call.1} parent=1 // pred_fallthru
      _
    // Predicated region
    $region14: #{tpu_custom_call.1} parent=1 // pred_check
      _
    $region15: #{tpu_custom_call.1} parent=1 // pred_check_branch
      %25 = sbr.rel (0) target = $region17
    $region16: #{tpu_custom_call.1} parent=1 // pred_region
      %26 = dma.done [#allocation3], 128
    $region17: #{tpu_custom_call.1} parent=1 // pred_fallthru
      _
    %v27 = vld [vmem:[%s0] sm:$0xf]
    %v28 = vld [vmem:[#allocation2] sm:$0xff]
    %v29 = vld [vmem:[%s2] sm:$0xf]
    %31 = vset.pattern.permute.xlu0 0
    %32 = vperm.xlu0 %31, %v29
    %v33 = vpop.permute.xlu0 %32
    %35 = vmatprep.subr.mxu0 0.0
    %36 = vmatpush1.xpose.msra.mxu0 0.0
    %37 = vmatprep.subr.mxu0 0.0
    %38 = vmatpush1.xpose.msra.mxu0 0.0
    %39 = vmatprep.subr.mxu0 0.0
    %40 = vmatpush1.xpose.msra.mxu0 0.0
    %41 = vmatprep.subr.mxu0 0.0
    %42 = vmatpush1.xpose.msra.mxu0 0.0
    %43 = vmatprep.subr.mxu0 0.0
    %44 = vmatpush1.xpose.msra.mxu0 0.0
    %45 = vmatprep.subr.mxu0 0.0
    %46 = vmatpush1.xpose.msra.mxu0 0.0
    %47 = vmatprep.subr.mxu0 0.0
    %48 = vmatpush1.xpose.msra.mxu0 0.0
    %49 = vmatprep.subr.mxu0 0.0
    %50 = vmatpush1.xpose.msra.mxu0 0.0
    %51 = vmatprep.subr.mxu0 0.0
    %52 = vmatpush1.xpose.msra.mxu0 0.0
    %53 = vmatprep.subr.mxu0 0.0
    %54 = vmatpush1.xpose.msra.mxu0 0.0
    %55 = vmatprep.subr.mxu0 0.0
    %56 = vmatpush1.xpose.msra.mxu0 0.0
    %57 = vmatprep.subr.mxu0 0.0
    %58 = vmatpush1.xpose.msra.mxu0 0.0
    %59 = vmatprep.subr.mxu0 0.0
    %60 = vmatpush1.xpose.msra.mxu0 0.0
    %61 = vmatprep.subr.mxu0 0.0
    %62 = vmatpush1.xpose.msra.mxu0 0.0
    %63 = vmatprep.subr.mxu0 0.0
    %64 = vmatpush1.xpose.msra.mxu0 0.0
    %65 = vmatprep.subr.mxu0 0.0
    %66 = vmatpush1.xpose.msra.mxu0 %v28
    %67 = vmatprep.subr.mxu0 0.0
    %68 = vmatpush2.xpose.msra.mxu0 0.0
    %69 = vmatprep.subr.mxu0 0.0
    %70 = vmatpush2.xpose.msra.mxu0 0.0
    %71 = vmatprep.subr.mxu0 0.0
    %72 = vmatpush2.xpose.msra.mxu0 0.0
    %73 = vmatprep.subr.mxu0 0.0
    %74 = vmatpush2.xpose.msra.mxu0 0.0
    %75 = vmatprep.subr.mxu0 0.0
    %76 = vmatpush2.xpose.msra.mxu0 0.0
    %77 = vmatprep.subr.mxu0 0.0
    %78 = vmatpush2.xpose.msra.mxu0 0.0
    %79 = vmatprep.subr.mxu0 0.0
    %80 = vmatpush2.xpose.msra.mxu0 0.0
    %81 = vmatprep.subr.mxu0 0.0
    %82 = vmatpush2.xpose.msra.mxu0 0.0
    %83 = vmatprep.subr.mxu0 0.0
    %84 = vmatpush2.xpose.msra.mxu0 0.0
    %85 = vmatprep.subr.mxu0 0.0
    %86 = vmatpush2.xpose.msra.mxu0 0.0
    %87 = vmatprep.subr.mxu0 0.0
    %88 = vmatpush2.xpose.msra.mxu0 0.0
    %89 = vmatprep.subr.mxu0 0.0
    %90 = vmatpush2.xpose.msra.mxu0 0.0
    %91 = vmatprep.subr.mxu0 0.0
    %92 = vmatpush2.xpose.msra.mxu0 0.0
    %93 = vmatprep.subr.mxu0 0.0
    %94 = vmatpush2.xpose.msra.mxu0 0.0
    %95 = vmatprep.subr.mxu0 0.0
    %96 = vmatpush2.xpose.msra.mxu0 0.0
    %97 = vmatprep.subr.mxu0 0.0
    %98 = vmatpush2.xpose.msra.mxu0 0.0
    %99 = vmatprep.mubr.f32.mxu0 0.0
    %100 = vmatmul.mubr.f32.gmra.mxu0 %v27
    %v101 = vpop.f32.mrf.mxu0
    %v102 = vadd.f32 %v33, %v101
    %v103 = vpop.f32.mrf.mxu0
    %104 = vdwg.mxu0
    %vm105 = vcmask 60416
    %106 = vst.msk [vmem:[#allocation5] sm:$0xf] %vm105, %v102
    // Predicated region
    $region18: #{tpu_custom_call.1} parent=1 // pred_check
      _
    $region19: #{tpu_custom_call.1} parent=1 // pred_check_branch
      %108 = sbr.rel (0) target = $region21
    $region20: #{tpu_custom_call.1} parent=1 // pred_region
      %s110 = ssub.s32 64, 64
      %111 = vsyncadd [#allocation4], %s110
      %s113 = sshll.u32 [#allocation5], 4
      %s114 = int_to_ptr.vmem [resolvable:$true] %s113
      %116 = dma.vmem_to_hbm [thread:$0]  %s114, 64, %s3, [#allocation4]
    $region21: #{tpu_custom_call.1} parent=1 // pred_fallthru
      _
    // Predicated region
    $region22: #{tpu_custom_call.1} parent=1 // pred_check
      _
    $region23: #{tpu_custom_call.1} parent=1 // pred_check_branch
      %118 = sbr.rel (0) target = $region25
    $region24: #{tpu_custom_call.1} parent=1 // pred_region
      %119 = dma.done [#allocation4], 64
    $region25: #{tpu_custom_call.1} parent=1 // pred_fallthru
      _
    %120 = vsyncpa [#allocation3], 1
    %121 = vsyncpa [#allocation4], 1

</llo_original>
